<compile_context>
chip_gen: v5e
topology: v5e:2x2
jax: 0.10.0
libtpu: 0.0.40
codegen_flags: <defaults>
</compile_context>

<pallas_src>
import functools

import jax
import jax.numpy as jnp
from jax.experimental import pallas as pl
from jax.experimental.pallas import tpu as pltpu

_OUT_TILE = (8, 128)  # lane-dense per-shard output block


def _kdct_kernel(stu_ref, tch_ref, lab_ref, out_ref, acc_ref, *,
                 alpha, n_rows, c, tile_n, tiles_per_shard):
    p = pl.program_id(0)            # TensorCore shard
    t = pl.program_id(1)            # batch tile within the shard

    @pl.when(t == 0)
    def _init():
        acc_ref[...] = jnp.zeros_like(acc_ref)

    stu = stu_ref[...].astype(jnp.float32)       # (tile_n, C) student logits
    tch = tch_ref[...].astype(jnp.float32)       # (tile_n, C) teacher logits
    lab = lab_ref[...]                           # (tile_n, 1) int32 labels

    # Row-validity mask from the *logical* (unclamped) row range of this grid
    # step; rows of the ragged / duplicated tail tile are selected away below.
    row0 = (p * tiles_per_shard + t) * tile_n
    ridx = row0 + jax.lax.broadcasted_iota(jnp.int32, (tile_n, 1), 0)
    valid = ridx < n_rows                        # (tile_n, 1) bool

    col = jax.lax.broadcasted_iota(jnp.int32, (tile_n, c), 1)
    onehot_b = col == lab                        # (tile_n, C) bool

    # ---- student log-softmax -------------------------------------------------
    stu_shift = stu - jnp.max(stu, axis=1, keepdims=True)
    log_p_stu = stu_shift - jnp.log(
        jnp.sum(jnp.exp(stu_shift), axis=1, keepdims=True))

    w_ce = (1.0 - alpha) / n_rows
    w_kl = alpha / (n_rows * c)

    # cross-entropy folded directly into the pre-weighted sum (single select)
    ce_w = jnp.where(onehot_b, (-w_ce) * log_p_stu, 0.0)

    # ---- teacher softmax: per-row normalizer on the EUP reciprocal slot -------
    tch_shift = tch - jnp.max(tch, axis=1, keepdims=True)
    e = jnp.exp(tch_shift)
    p_tch = e * pl.reciprocal(jnp.sum(e, axis=1, keepdims=True), approx=True)

    # teacher prediction (first argmax) straight from the shifted logits
    pred = jnp.min(jnp.where(tch_shift == 0.0, col, c), axis=1, keepdims=True)
    wrong = (pred != lab).astype(jnp.float32)    # (tile_n, 1)

    # ---- direction correction for wrongly-predicted rows (masked update) ------
    onehot = onehot_b.astype(jnp.float32)
    D = onehot - p_tch
    sumsq = jnp.sum(D * D, axis=1, keepdims=True)
    inv_d = jax.lax.rsqrt(jnp.where(sumsq > 0.0, sumsq, 1.0))
    p_adj = p_tch + (0.7071 * wrong * inv_d) * D

    # ---- KL divergence (target<=0 contributes 0), positivity mask reused ------
    pos = p_adj > 0.0
    log_t = jnp.log(jnp.where(pos, p_adj, 1.0))
    kl_w = jnp.where(pos, (w_kl * p_adj) * (log_t - log_p_stu), 0.0)

    # ---- lane reduce -> row validity SELECT (never a multiply) -> sublane sum --
    row_sum = jnp.sum(ce_w + kl_w, axis=1, keepdims=True)        # (tile_n, 1)
    row_sum = jnp.where(valid, row_sum, 0.0)
    acc_ref[...] += jnp.sum(row_sum, axis=0, keepdims=True)      # (1, 1) scalar

    @pl.when(t == pl.num_programs(1) - 1)
    def _finalize():
        out_ref[...] = jnp.broadcast_to(acc_ref[...], _OUT_TILE)


def _vmem_bytes():
    """Physical per-core VMEM; conservative (v7x-safe) default if query fails."""
    try:
        v = int(getattr(pltpu.get_tpu_info(), "vmem_capacity_bytes", 0))
        if v > 0:
            return v
    except Exception:
        pass
    return 64 * 1024 * 1024


def _is_two_core_chip():
    try:
        return "v7" in jax.devices()[0].device_kind.lower()
    except Exception:
        return False


def kdct_loss(output_stu, output_tch, label, alpha, max_tile_rows=None):
    n, c = output_stu.shape
    itemsize = jnp.dtype(output_stu.dtype).itemsize
    sub = 8 if itemsize >= 4 else (16 if itemsize == 2 else 32)

    # --- tile sizing from a per-generation VMEM budget --------------------------
    phys_vmem = _vmem_bytes()
    tile_budget = phys_vmem // 2          # ~50% of physical for blocks + temporaries
    # per-row footprint: 2 logit inputs x 2 pipeline buffers (original dtype)
    # + double-buffered int32 label column + ~10 live f32 (tile_n, C) temporaries.
    per_row = 2 * 2 * c * itemsize + 2 * 4 + 10 * c * 4
    max_rows = max(sub, min(4096, tile_budget // max(per_row, 1)))
    if max_tile_rows is not None:
        max_rows = min(max_rows, max(max_tile_rows, 1))
    if n <= max_rows:
        tile_n = n                        # single full-batch tile (full dim allowed)
    else:
        tile_n = max(sub, (max_rows // sub) * sub)
    tiles = pl.cdiv(n, tile_n)

    # --- split the tile range across TensorCores only where 2 TCs exist (v7x) ---
    num_shards = 2 if (_is_two_core_chip() and tiles >= 2) else 1
    tiles_per_shard = pl.cdiv(tiles, num_shards)
    last_block = tiles - 1

    # Clamp the block index so a shard's trailing (fully logical-OOB) tile still
    # DMAs in-bounds data; its rows are removed by the in-kernel validity mask.
    def block_map(p, t):
        return (jnp.minimum(p * tiles_per_shard + t, last_block), 0)

    logit_spec = pl.BlockSpec((tile_n, c), block_map)
    label_spec = pl.BlockSpec((tile_n, 1), block_map)

    lab2d = label.astype(jnp.int32).reshape(n, 1)

    kernel = functools.partial(
        _kdct_kernel, alpha=float(alpha), n_rows=n, c=c,
        tile_n=tile_n, tiles_per_shard=tiles_per_shard)

    core_parallel = getattr(pltpu, "CORE_PARALLEL", "parallel")
    sem0 = core_parallel if num_shards == 2 else "arbitrary"

    out = pl.pallas_call(
        kernel,
        out_shape=jax.ShapeDtypeStruct(
            (num_shards * _OUT_TILE[0], _OUT_TILE[1]), jnp.float32),
        grid_spec=pltpu.PrefetchScalarGridSpec(
            num_scalar_prefetch=0,
            grid=(num_shards, tiles_per_shard),
            in_specs=[logit_spec, logit_spec, label_spec],
            out_specs=pl.BlockSpec(_OUT_TILE, lambda p, t: (p, 0)),
            scratch_shapes=[pltpu.VMEM((1, 1), jnp.float32)],
        ),
        compiler_params=pltpu.CompilerParams(
            dimension_semantics=(sem0, "arbitrary"),
            vmem_limit_bytes=int(phys_vmem * 0.7),
        ),
    )(output_stu, output_tch, lab2d)

    # one partial loss per shard, broadcast over its (8,128) output block
    return jnp.sum(out[::_OUT_TILE[0], 0])


def _reference(stu, tch, label, alpha):
    """Pure-JAX reference mirroring the PyTorch forward pass."""
    n, c = stu.shape
    log_p = jax.nn.log_softmax(stu.astype(jnp.float32), axis=1)
    onehot = jax.nn.one_hot(label, c, dtype=jnp.float32)
    loss_stu = -jnp.mean(jnp.sum(onehot * log_p, axis=1))
    p_t = jax.nn.softmax(tch.astype(jnp.float32), axis=1)
    pred = jnp.argmax(p_t, axis=1)
    wrong = (pred != label)[:, None].astype(jnp.float32)
    D = onehot - p_t
    d = jnp.sqrt(jnp.sum(D * D, axis=1, keepdims=True))
    p_adj = p_t + 0.7071 * wrong * (D / jnp.where(d > 0, d, 1.0))
    kl = jnp.where(p_adj > 0,
                   p_adj * (jnp.log(jnp.where(p_adj > 0, p_adj, 1.0)) - log_p),
                   0.0)
    loss_tch = jnp.sum(kl) / (n * c)
    return loss_stu * (1.0 - alpha) + loss_tch * alpha


if __name__ == "__main__":
    key = jax.random.PRNGKey(0)
    k1, k2, k3 = jax.random.split(key, 3)
    alpha = 0.5

    # approx EUP reciprocal in the teacher softmax -> compare with relaxed tol
    TOL = dict(atol=2e-3, rtol=2e-3)

    # ---- test 1: small aligned batch, single tile ------------------------------
    N, C = 8, 16
    output_stu = jax.random.normal(k1, (N, C), dtype=jnp.float32)
    output_tch = jax.random.normal(k2, (N, C), dtype=jnp.float32)
    label = jax.random.randint(k3, (N,), 0, C, dtype=jnp.int32)

    loss = kdct_loss(output_stu, output_tch, label, alpha)
    jax.block_until_ready(loss)
    ref = _reference(output_stu, output_tch, label, alpha)
    assert jnp.allclose(loss, ref, **TOL), (loss, ref)

    # ---- test 2: ragged batch (no padding of logits; in-kernel validity mask) --
    N2 = 20
    k4, k5, k6 = jax.random.split(jax.random.PRNGKey(1), 3)
    stu2 = jax.random.normal(k4, (N2, C), dtype=jnp.float32)
    tch2 = jax.random.normal(k5, (N2, C), dtype=jnp.float32)
    lab2 = jax.random.randint(k6, (N2,), 0, C, dtype=jnp.int32)

    loss2 = kdct_loss(stu2, tch2, lab2, alpha, max_tile_rows=8)  # forces 3 tiles
    jax.block_until_ready(loss2)
    ref2 = _reference(stu2, tch2, lab2, alpha)
    assert jnp.allclose(loss2, ref2, **TOL), (loss2, ref2)

    print("KERNEL_OK")
</pallas_src>

<mosaic_0001>
module attributes {stable_mosaic.version = 11 : i64} {
  func.func @_kdct_kernel(%arg0: i32, %arg1: i32, %arg2: memref<8x16xf32, #tpu.memory_space<vmem>>, %arg3: memref<8x16xf32, #tpu.memory_space<vmem>>, %arg4: memref<8x1xi32, #tpu.memory_space<vmem>>, %arg5: memref<8x128xf32, #tpu.memory_space<vmem>>, %arg6: memref<1x1xf32, #tpu.memory_space<vmem>>) attributes {dimension_semantics = [#tpu.dimension_semantics<arbitrary>, #tpu.dimension_semantics<arbitrary>], iteration_bounds = array<i64: 1, 1>, scalar_prefetch = 0 : i64, scratch_operands = 1 : i64, tpu.core_type = #tpu.core_type<tc>, window_params = [{transform_indices = @transform_0, window_bounds = array<i64: 8, 16>}, {transform_indices = @transform_1, window_bounds = array<i64: 8, 16>}, {transform_indices = @transform_2, window_bounds = array<i64: 8, 1>}, {transform_indices = @transform_3, window_bounds = array<i64: 8, 128>}]} {
    %c0_i32 = arith.constant 0 : i32
    %0 = arith.cmpi eq, %arg1, %c0_i32 : i32
    %1 = arith.extui %0 : i1 to i32
    %c0_i32_0 = arith.constant 0 : i32
    %2 = arith.cmpi ne, %1, %c0_i32_0 : i32
    scf.if %2 {
      %cst_31 = arith.constant 0.000000e+00 : f32
      %91 = vector.broadcast %cst_31 : f32 to vector<1x1xf32>
      %c0_32 = arith.constant 0 : index
      %c0_33 = arith.constant 0 : index
      %92 = vector.load %arg6[%c0_32, %c0_33] : memref<1x1xf32, #tpu.memory_space<vmem>>, vector<1x1xf32>
      tpu.vector_store %arg6[%c0_32, %c0_33], %91 {strides = array<i32>} : memref<1x1xf32, #tpu.memory_space<vmem>>, vector<1x1xf32>,
    } else {
    }
    %c0 = arith.constant 0 : index
    %c0_1 = arith.constant 0 : index
    %3 = vector.load %arg2[%c0, %c0_1] : memref<8x16xf32, #tpu.memory_space<vmem>>, vector<8x16xf32>
    %c0_2 = arith.constant 0 : index
    %c0_3 = arith.constant 0 : index
    %4 = vector.load %arg3[%c0_2, %c0_3] : memref<8x16xf32, #tpu.memory_space<vmem>>, vector<8x16xf32>
    %c0_4 = arith.constant 0 : index
    %c0_5 = arith.constant 0 : index
    %5 = vector.load %arg4[%c0_4, %c0_5] : memref<8x1xi32, #tpu.memory_space<vmem>>, vector<8x1xi32>
    %c1_i32 = arith.constant 1 : i32
    %6 = arith.muli %arg0, %c1_i32 : i32
    %7 = arith.addi %6, %arg1 : i32
    %c8_i32 = arith.constant 8 : i32
    %8 = arith.muli %7, %c8_i32 : i32
    %9 = tpu.iota {dimensions = array<i32: 0>} : vector<8x1xi32>
    %10 = vector.broadcast %8 : i32 to vector<8x1xi32>
    %11 = arith.addi %10, %9 : vector<8x1xi32>
    %c8_i32_6 = arith.constant 8 : i32
    %12 = vector.broadcast %c8_i32_6 : i32 to vector<8x1xi32>
    %13 = arith.cmpi slt, %11, %12 : vector<8x1xi32>
    %14 = tpu.iota {dimensions = array<i32: 1>} : vector<8x16xi32>
    %15 = vector.broadcast %5 : vector<8x1xi32> to vector<8x16xi32>
    %16 = arith.cmpi eq, %14, %15 : vector<8x16xi32>
    %cst = arith.constant dense<0xFF800000> : vector<8xf32>
    %17 = vector.multi_reduction <maximumf>, %3, %cst [1] : vector<8x16xf32> to vector<8xf32>
    %18 = vector.shape_cast %17 : vector<8xf32> to vector<8x1xf32>
    %19 = vector.broadcast %18 : vector<8x1xf32> to vector<8x16xf32>
    %20 = arith.subf %3, %19 : vector<8x16xf32>
    %21 = math.exp %20 : vector<8x16xf32>
    %cst_7 = arith.constant dense<0.000000e+00> : vector<8xf32>
    %22 = vector.multi_reduction <add>, %21, %cst_7 [1] : vector<8x16xf32> to vector<8xf32>
    %23 = vector.shape_cast %22 : vector<8xf32> to vector<8x1xf32>
    %24 = math.log %23 : vector<8x1xf32>
    %25 = vector.broadcast %24 : vector<8x1xf32> to vector<8x16xf32>
    %26 = arith.subf %20, %25 : vector<8x16xf32>
    %cst_8 = arith.constant -6.250000e-02 : f32
    %27 = vector.broadcast %cst_8 : f32 to vector<8x16xf32>
    %28 = arith.mulf %27, %26 : vector<8x16xf32>
    %cst_9 = arith.constant 0.000000e+00 : f32
    %29 = vector.broadcast %cst_9 : f32 to vector<8x16xf32>
    %30 = arith.select %16, %28, %29 : vector<8x16xi1>, vector<8x16xf32>
    %cst_10 = arith.constant dense<0xFF800000> : vector<8xf32>
    %31 = vector.multi_reduction <maximumf>, %4, %cst_10 [1] : vector<8x16xf32> to vector<8xf32>
    %32 = vector.shape_cast %31 : vector<8xf32> to vector<8x1xf32>
    %33 = vector.broadcast %32 : vector<8x1xf32> to vector<8x16xf32>
    %34 = arith.subf %4, %33 : vector<8x16xf32>
    %35 = math.exp %34 : vector<8x16xf32>
    %cst_11 = arith.constant dense<0.000000e+00> : vector<8xf32>
    %36 = vector.multi_reduction <add>, %35, %cst_11 [1] : vector<8x16xf32> to vector<8xf32>
    %37 = vector.shape_cast %36 : vector<8xf32> to vector<8x1xf32>
    %38 = tpu.reciprocal %37 {approx = true} : vector<8x1xf32> -> vector<8x1xf32>
    %39 = vector.broadcast %38 : vector<8x1xf32> to vector<8x16xf32>
    %40 = arith.mulf %35, %39 : vector<8x16xf32>
    %cst_12 = arith.constant 0.000000e+00 : f32
    %41 = vector.broadcast %cst_12 : f32 to vector<8x16xf32>
    %42 = arith.cmpf oeq, %34, %41 : vector<8x16xf32>
    %c16_i32 = arith.constant 16 : i32
    %43 = vector.broadcast %c16_i32 : i32 to vector<8x16xi32>
    %44 = arith.select %42, %14, %43 : vector<8x16xi1>, vector<8x16xi32>
    %cst_13 = arith.constant dense<2147483647> : vector<8xi32>
    %45 = vector.multi_reduction <minsi>, %44, %cst_13 [1] : vector<8x16xi32> to vector<8xi32>
    %46 = vector.shape_cast %45 : vector<8xi32> to vector<8x1xi32>
    %47 = arith.cmpi ne, %46, %5 : vector<8x1xi32>
    %48 = arith.extui %47 : vector<8x1xi1> to vector<8x1xi32>
    %49 = arith.sitofp %48 : vector<8x1xi32> to vector<8x1xf32>
    %50 = arith.extui %16 : vector<8x16xi1> to vector<8x16xi32>
    %51 = arith.sitofp %50 : vector<8x16xi32> to vector<8x16xf32>
    %52 = arith.subf %51, %40 : vector<8x16xf32>
    %53 = arith.mulf %52, %52 : vector<8x16xf32>
    %cst_14 = arith.constant dense<0.000000e+00> : vector<8xf32>
    %54 = vector.multi_reduction <add>, %53, %cst_14 [1] : vector<8x16xf32> to vector<8xf32>
    %55 = vector.shape_cast %54 : vector<8xf32> to vector<8x1xf32>
    %cst_15 = arith.constant 0.000000e+00 : f32
    %56 = vector.broadcast %cst_15 : f32 to vector<8x1xf32>
    %57 = arith.cmpf ogt, %55, %56 : vector<8x1xf32>
    %cst_16 = arith.constant 1.000000e+00 : f32
    %58 = vector.broadcast %cst_16 : f32 to vector<8x1xf32>
    %59 = arith.select %57, %55, %58 : vector<8x1xi1>, vector<8x1xf32>
    %60 = math.rsqrt %59 : vector<8x1xf32>
    %cst_17 = arith.constant 0.707099974 : f32
    %61 = vector.broadcast %cst_17 : f32 to vector<8x1xf32>
    %62 = arith.mulf %61, %49 : vector<8x1xf32>
    %63 = arith.mulf %62, %60 : vector<8x1xf32>
    %64 = vector.broadcast %63 : vector<8x1xf32> to vector<8x16xf32>
    %65 = arith.mulf %64, %52 : vector<8x16xf32>
    %66 = arith.addf %40, %65 : vector<8x16xf32>
    %cst_18 = arith.constant 0.000000e+00 : f32
    %67 = vector.broadcast %cst_18 : f32 to vector<8x16xf32>
    %68 = arith.cmpf ogt, %66, %67 : vector<8x16xf32>
    %cst_19 = arith.constant 1.000000e+00 : f32
    %69 = vector.broadcast %cst_19 : f32 to vector<8x16xf32>
    %70 = arith.select %68, %66, %69 : vector<8x16xi1>, vector<8x16xf32>
    %71 = math.log %70 : vector<8x16xf32>
    %cst_20 = arith.constant 3.906250e-03 : f32
    %72 = vector.broadcast %cst_20 : f32 to vector<8x16xf32>
    %73 = arith.mulf %72, %66 : vector<8x16xf32>
    %74 = arith.subf %71, %26 : vector<8x16xf32>
    %75 = arith.mulf %73, %74 : vector<8x16xf32>
    %cst_21 = arith.constant 0.000000e+00 : f32
    %76 = vector.broadcast %cst_21 : f32 to vector<8x16xf32>
    %77 = arith.select %68, %75, %76 : vector<8x16xi1>, vector<8x16xf32>
    %78 = arith.addf %30, %77 : vector<8x16xf32>
    %cst_22 = arith.constant dense<0.000000e+00> : vector<8xf32>
    %79 = vector.multi_reduction <add>, %78, %cst_22 [1] : vector<8x16xf32> to vector<8xf32>
    %80 = vector.shape_cast %79 : vector<8xf32> to vector<8x1xf32>
    %cst_23 = arith.constant 0.000000e+00 : f32
    %81 = vector.broadcast %cst_23 : f32 to vector<8x1xf32>
    %82 = arith.select %13, %80, %81 : vector<8x1xi1>, vector<8x1xf32>
    %c0_24 = arith.constant 0 : index
    %c0_25 = arith.constant 0 : index
    %83 = vector.load %arg6[%c0_24, %c0_25] : memref<1x1xf32, #tpu.memory_space<vmem>>, vector<1x1xf32>
    %cst_26 = arith.constant dense<0.000000e+00> : vector<1xf32>
    %84 = vector.multi_reduction <add>, %82, %cst_26 [0] : vector<8x1xf32> to vector<1xf32>
    %85 = vector.shape_cast %84 : vector<1xf32> to vector<1x1xf32>
    %86 = arith.addf %83, %85 : vector<1x1xf32>
    %c0_27 = arith.constant 0 : index
    %c0_28 = arith.constant 0 : index
    %87 = vector.load %arg6[%c0_27, %c0_28] : memref<1x1xf32, #tpu.memory_space<vmem>>, vector<1x1xf32>
    tpu.vector_store %arg6[%c0_27, %c0_28], %86 {strides = array<i32>} : memref<1x1xf32, #tpu.memory_space<vmem>>, vector<1x1xf32>,
    %c0_i32_29 = arith.constant 0 : i32
    %88 = arith.cmpi eq, %arg1, %c0_i32_29 : i32
    %89 = arith.extui %88 : i1 to i32
    %c0_i32_30 = arith.constant 0 : i32
    %90 = arith.cmpi ne, %89, %c0_i32_30 : i32
    scf.if %90 {
      %c0_31 = arith.constant 0 : index
      %c0_32 = arith.constant 0 : index
      %91 = vector.load %arg6[%c0_31, %c0_32] : memref<1x1xf32, #tpu.memory_space<vmem>>, vector<1x1xf32>
      %92 = vector.shape_cast %91 : vector<1x1xf32> to vector<1x1xf32>
      %93 = vector.broadcast %92 : vector<1x1xf32> to vector<8x128xf32>
      %c0_33 = arith.constant 0 : index
      %c0_34 = arith.constant 0 : index
      %94 = vector.load %arg5[%c0_33, %c0_34] : memref<8x128xf32, #tpu.memory_space<vmem>>, vector<8x128xf32>
      tpu.vector_store %arg5[%c0_33, %c0_34], %93 {strides = array<i32>} : memref<8x128xf32, #tpu.memory_space<vmem>>, vector<8x128xf32>,
    } else {
    }
    return
  }
  func.func @transform_0(%arg0: i32, %arg1: i32) -> (i32, i32) {
    %c1_i32 = arith.constant 1 : i32
    %0 = arith.muli %arg0, %c1_i32 : i32
    %1 = arith.addi %0, %arg1 : i32
    %c0_i32 = arith.constant 0 : i32
    %2 = arith.minsi %1, %c0_i32 : i32
    %c0_i32_0 = arith.constant 0 : i32
    %c0_i32_1 = arith.constant 0 : i32
    return %2, %c0_i32_0 : i32, i32
  }
  func.func @transform_1(%arg0: i32, %arg1: i32) -> (i32, i32) {
    %c1_i32 = arith.constant 1 : i32
    %0 = arith.muli %arg0, %c1_i32 : i32
    %1 = arith.addi %0, %arg1 : i32
    %c0_i32 = arith.constant 0 : i32
    %2 = arith.minsi %1, %c0_i32 : i32
    %c0_i32_0 = arith.constant 0 : i32
    %c0_i32_1 = arith.constant 0 : i32
    return %2, %c0_i32_0 : i32, i32
  }
  func.func @transform_2(%arg0: i32, %arg1: i32) -> (i32, i32) {
    %c1_i32 = arith.constant 1 : i32
    %0 = arith.muli %arg0, %c1_i32 : i32
    %1 = arith.addi %0, %arg1 : i32
    %c0_i32 = arith.constant 0 : i32
    %2 = arith.minsi %1, %c0_i32 : i32
    %c0_i32_0 = arith.constant 0 : i32
    %c0_i32_1 = arith.constant 0 : i32
    return %2, %c0_i32_0 : i32, i32
  }
  func.func @transform_3(%arg0: i32, %arg1: i32) -> (i32, i32) {
    %c0_i32 = arith.constant 0 : i32
    %c0_i32_0 = arith.constant 0 : i32
    return %arg0, %c0_i32 : i32, i32
  }
}

</mosaic_0001>

<llo_original>
// kernel: tpu_custom_call.1
$region0: #{tpu_custom_call.1}
  #allocation0 [shape = 'u32[]', space=smem, size = 0x4, offset = 0x4, fixed_abs, tag = 'smem constant byte address 0x4 - core index']
  #allocation1 [shape = 'u32[72,128]{1,0:T(1,128)}', space=vmem, size = 0x9000, scoped, tag = 'internal scratch']
  #allocation2 [shape = 'f32[1,1]{1,0:T(1,128)}', space=vmem, size = 0x200, scoped, tag = 'scratch operand']
  %s0 = inlined_call_operand.vmem [shape: f32[8,16], index: 0, kind: input, shape index: {}]
  %s1 = inlined_call_operand.hbm [shape: f32[8,16], index: 1, kind: input, shape index: {}]
  %s2 = inlined_call_operand.vmem [shape: s32[8,1], index: 2, kind: input, shape index: {}]
  %s3 = inlined_call_operand.hbm [shape: f32[8,128], index: 3, kind: output, shape index: {}]
  %s4 = sld [smem:[#allocation0]]
  $region34: #{tpu_custom_call.1} parent=0
    _
  %s6 = ssub.s32 1, %s4
  %s7 = scalar_select 0, %s6, %s4
  $region1: #{tpu_custom_call.1} parent=0
    #allocation3 [shape = 'u8[4096]{0}', space=vmem, size = 0x1000, scoped, tag = 'input window, operand 1, single buffered']
    #allocation4 [shape = 's32[1]{0}', space=sflag, size = 0x4, scoped, tag = 'scoped memory for tpu_custom_call.1']
    #allocation5 [shape = 's32[1]{0}', space=sflag, size = 0x4, scoped, tag = 'scoped memory for tpu_custom_call.1']
    #allocation6 [shape = 'u8[4096]{0}', space=vmem, size = 0x1000, scoped, tag = 'output window, operand 0, single buffered']
    %8 = vsyncpa [#allocation4], 0
    %9 = vsyncpa [#allocation5], 0
    // Predicated region
    $region2: #{tpu_custom_call.1} parent=1 // pred_check
      _
    $region3: #{tpu_custom_call.1} parent=1 // pred_check_branch
      %11 = sbr.rel (0) target = $region5
    $region4: #{tpu_custom_call.1} parent=1 // pred_region
      %s12 = sadd.s32 0, 0
      %p13 = scmp.lt.s32.totalorder %s12, 0
      %s14 = scalar_select %p13, %s12, 0
      %p15 = scmp.lt.s32.totalorder %s14, 0
      %s16 = scalar_select %p15, %s14, 0
      %s17 = smul.addr %s16, 8
      %s18 = scalar_lea.vmem %s0, %s17
      %s19 = sadd.s32 0, 0
      %p20 = scmp.lt.s32.totalorder %s19, 0
      %s21 = scalar_select %p20, %s19, 0
    $region5: #{tpu_custom_call.1} parent=1 // pred_fallthru
      _
    // Predicated region
    $region6: #{tpu_custom_call.1} parent=1 // pred_check
      _
    $region7: #{tpu_custom_call.1} parent=1 // pred_check_branch
      %23 = sbr.rel (0) target = $region9
    $region8: #{tpu_custom_call.1} parent=1 // pred_region
      %s24 = sadd.s32 0, 0
      %p25 = scmp.lt.s32.totalorder %s24, 0
      %s26 = scalar_select %p25, %s24, 0
      %28 = vsyncadd [#allocation4], 0
      %s29 = smul.addr %s26, 8
      %s30 = scalar_lea.hbm %s1, %s29
      %s32 = sshll.u32 %s30, 4
      %s33 = int_to_ptr.hbm [resolvable:$true] %s32
      %s34 = sshll.u32 [#allocation3], 4
      %s35 = int_to_ptr.vmem [resolvable:$true] %s34
      %37 = dma.hbm_to_vmem [thread:$0]  %s33, 128, %s35, [#allocation4]
    $region9: #{tpu_custom_call.1} parent=1 // pred_fallthru
      _
    // Predicated region
    $region10: #{tpu_custom_call.1} parent=1 // pred_check
      _
    $region11: #{tpu_custom_call.1} parent=1 // pred_check_branch
      %39 = sbr.rel (0) target = $region13
    $region12: #{tpu_custom_call.1} parent=1 // pred_region
      %s40 = sadd.s32 0, 0
      %p41 = scmp.lt.s32.totalorder %s40, 0
      %s42 = scalar_select %p41, %s40, 0
      %p43 = scmp.lt.s32.totalorder %s42, 0
      %s44 = scalar_select %p43, %s42, 0
      %s45 = smul.addr %s44, 8
      %s46 = scalar_lea.vmem %s2, %s45
      %s47 = sadd.s32 0, 0
      %p48 = scmp.lt.s32.totalorder %s47, 0
      %s49 = scalar_select %p48, %s47, 0
    $region13: #{tpu_custom_call.1} parent=1 // pred_fallthru
      _
    // Predicated region
    $region14: #{tpu_custom_call.1} parent=1 // pred_check
      _
    $region15: #{tpu_custom_call.1} parent=1 // pred_check_branch
      %51 = sbr.rel (0) target = $region17
    $region16: #{tpu_custom_call.1} parent=1 // pred_region
      %53 = dma.done [#allocation4], 128
    $region17: #{tpu_custom_call.1} parent=1 // pred_fallthru
      _
    %s54 = sadd.s32 0, 0
    %p55 = scmp.lt.s32.totalorder %s54, 0
    %s56 = scalar_select %p55, %s54, 0
    %p57 = scmp.lt.s32.totalorder %s56, 0
    %s58 = scalar_select %p57, %s56, 0
    %s59 = smul.addr %s58, 8
    %s60 = scalar_lea.vmem %s0, %s59
    %s61 = sadd.s32 0, 0
    %p62 = scmp.lt.s32.totalorder %s61, 0
    %s63 = scalar_select %p62, %s61, 0
    %p64 = scmp.lt.s32.totalorder %s63, 0
    %s65 = scalar_select %p64, %s63, 0
    %s66 = smul.addr %s65, 8
    %s67 = scalar_lea.vmem %s2, %s66
    %s68 = sadd.s32 0, 0
    %p69 = scmp.lt.s32.totalorder %s68, 0
    %s70 = scalar_select %p69, %s68, 0
    %p71 = scmp.lt.s32.totalorder %s70, 0
    %s72 = scalar_select %p71, %s70, 0
    %s73 = smul.addr %s72, 8
    %s74 = scalar_lea.vmem %s0, %s73
    %s75 = sadd.s32 0, 0
    %p76 = scmp.lt.s32.totalorder %s75, 0
    %s77 = scalar_select %p76, %s75, 0
    %s78 = sadd.s32 0, 0
    %p79 = scmp.lt.s32.totalorder %s78, 0
    %s80 = scalar_select %p79, %s78, 0
    %s81 = sadd.s32 0, 0
    %p82 = scmp.lt.s32.totalorder %s81, 0
    %s83 = scalar_select %p82, %s81, 0
    %p84 = scmp.lt.s32.totalorder %s83, 0
    %s85 = scalar_select %p84, %s83, 0
    %s86 = smul.addr %s85, 8
    %s87 = scalar_lea.vmem %s2, %s86
    %s88 = sadd.s32 0, 0
    %p89 = scmp.lt.s32.totalorder %s88, 0
    %s90 = scalar_select %p89, %s88, 0
    %p91 = scmp.eq.s32.totalorder 0, 0
    // Predicated region
    $region18: #{tpu_custom_call.1} parent=1 // pred_check
      %p92 = pneg %p91
    $region19: #{tpu_custom_call.1} parent=1 // pred_check_branch
      %94 = sbr.rel (%p92) target = $region21
    $region20: #{tpu_custom_call.1} parent=1 // pred_region
      %vm95 = vcmask 0
      %96 = vst.msk [vmem:[#allocation2] sm:$0x1] %vm95, 0.0
    $region21: #{tpu_custom_call.1} parent=1 // pred_fallthru
      _
    %v97 = vld [vmem:[%s74] sm:$0xff]
    %v98 = vld [vmem:[#allocation3] sm:$0xff]
    %v99 = vld [vmem:[%s87] sm:$0xff]
    %s100 = sadd.s32 0, 0
    %s101 = smul.u32 %s100, 8
    %v102 = vlaneseq
    %v103 = vshrl.u32 %v102, 7
    %v104 = vstv %s101
    %v105 = vadd.s32 %v104, %v103
    %vm106 = vcmp.lt.s32.totalorder %v105, 8
    %v107 = vlaneseq
    %v108 = vand.u32 %v107, 127
    %109 = vset.pattern.permute.xlu0 0
    %110 = vperm.xlu0 %109, %v99
    %v111 = vpop.permute.xlu0 %110
    %vm112 = vcmp.eq.s32.totalorder %v108, %v111
    %vm113 = vcmask 130048
    %v114 = vsel %vm113, %v97, -inf
    %115 = vmax.xlane.f32.xlu0 %v114
    %v116 = vpop.xlane.xlu0 %115
    %v117 = vsub.f32 %v97, %v116
    %v118 = vmul.f32 %v117, 1.442695
    %v119 = vpow.pop %v118
    %v120 = vsel %vm113, %v119, 0.0
    %121 = vadd.xlane.f32.xlu0 %v120
    %v122 = vpop.xlane.xlu0 %121
    %v123 = vlog2.pop %v122
    %v124 = vmul.f32 %v123, 0.6931472
    %v125 = vsub.f32 %v117, %v124
    %v126 = vmul.f32 %v125, -0.0625
    %v127 = vsel %vm112, %v126, 0.0
    %v128 = vsel %vm113, %v98, -inf
    %129 = vmax.xlane.f32.xlu0 %v128
    %v130 = vpop.xlane.xlu0 %129
    %v131 = vsub.f32 %v98, %v130
    %v132 = vmul.f32 %v131, 1.442695
    %v133 = vpow.pop %v132
    %v134 = vsel %vm113, %v133, 0.0
    %135 = vadd.xlane.f32.xlu0 %v134
    %v136 = vpop.xlane.xlu0 %135
    %v137 = vrcp.pop %v136
    %v138 = vmul.f32 %v133, %v137
    %vm139 = vcmp.eq.f32.partialorder %v131, 0.0
    %v140 = vsel %vm139, %v108, 16
    %v141 = vsel %vm113, %v140, 2147483647
    %v142 = vand.u32 %v141, 65535
    %v143 = vshra.s32 %v141, 16
    %v144 = vcvt.s32.f32 %v142
    %v145 = vcvt.s32.f32 %v143
    %146 = vmin.xlane.f32.xlu0 %v145
    %v147 = vpop.xlane.xlu0 %146
    %vm148 = vcmp.eq.f32.partialorder %v145, %v147
    %v149 = vsel %vm148, %v144, inf
    %150 = vmin.xlane.f32.xlu0 %v149
    %v151 = vpop.xlane.xlu0 %150
    %v152 = vcvt.f32.s32 %v151
    %v153 = vcvt.f32.s32 %v147
    %v154 = vshll.u32 %v153, 16
    %v155 = vadd.s32 %v154, %v152
    %vm156 = vcmp.ne.s32.totalorder %v155, %v99
    %v157 = vsel %vm156, 1, 0
    %v158 = vcvt.s32.f32 %v157
    %v159 = vsel %vm112, 1, 0
    %v160 = vcvt.s32.f32 %v159
    %v161 = vsub.f32 %v160, %v138
    %v162 = vmul.f32 %v161, %v161
    %v163 = vsel %vm113, %v162, 0.0
    %164 = vadd.xlane.f32.xlu0 %v163
    %v165 = vpop.xlane.xlu0 %164
    %vm166 = vcmp.gt.f32.partialorder %v165, 0.0
    %v167 = vsel %vm166, %v165, 1.0
    %v168 = vrsqrt.pop %v167
    %v169 = vmul.f32 %v168, %v167
    %v170 = vmul.f32 %v169, %v168
    %v171 = vmul.f32 0.5, %v170
    %v172 = vsub.f32 1.5, %v171
    %v173 = vmul.f32 %v168, %v172
    %vm174 = vweird.f32 %v167
    %vm175 = vweird.f32 %v168
    %vm176 = vmor %vm174, %vm175
    %v177 = vsel %vm176, %v168, %v173
    %v178 = vmul.f32 %v158, 0.7071
    %v179 = vmul.f32 %v178, %v177
    %181 = vset.pattern.permute.xlu0 0
    %182 = vperm.xlu0 %181, %v179
    %v183 = vpop.permute.xlu0 %182
    %v185 = vmul.f32 %v183, %v161
    %v186 = vadd.f32 %v138, %v185
    %vm187 = vcmp.gt.f32.partialorder %v186, 0.0
    %v188 = vsel %vm187, %v186, 1.0
    %v189 = vlog2.pop %v188
    %v190 = vmul.f32 %v189, 0.6931472
    %v191 = vmul.f32 %v186, 0.00390625
    %v192 = vsub.f32 %v190, %v125
    %v193 = vmul.f32 %v191, %v192
    %v194 = vsel %vm187, %v193, 0.0
    %v195 = vadd.f32 %v127, %v194
    %v196 = vsel %vm113, %v195, 0.0
    %197 = vadd.xlane.f32.xlu0 %v196
    %v198 = vpop.xlane.xlu0 %197
    %v199 = vsel %vm106, %v198, 0.0
    %v200 = vld [vmem:[#allocation2] sm:$0x1]
    %v201 = vrot.slane %v199, 4
    %v202 = vadd.f32 %v199, %v201
    %v203 = vrot.slane %v202, 2
    %v204 = vadd.f32 %v202, %v203
    %v205 = vrot.slane %v204, 1
    %v206 = vadd.f32 %v204, %v205
    %v207 = vadd.f32 %v200, %v206
    %vm208 = vcmask 0
    %209 = vst.msk [vmem:[#allocation2] sm:$0x1] %vm208, %v207
    // Predicated region
    $region22: #{tpu_custom_call.1} parent=1 // pred_check
      %p210 = pneg %p91
    $region23: #{tpu_custom_call.1} parent=1 // pred_check_branch
      %212 = sbr.rel (%p210) target = $region25
    $region24: #{tpu_custom_call.1} parent=1 // pred_region
      %v213 = vld [vmem:[#allocation2] sm:$0x1]
      %v215 = vperm.slane %v213, 0
      %216 = vset.pattern.permute.xlu0 0
      %217 = vperm.xlu0 %216, %v215
      %v218 = vpop.permute.xlu0 %217
      %220 = vst [vmem:[#allocation6] sm:$0xff] %v218
    $region25: #{tpu_custom_call.1} parent=1 // pred_fallthru
      _
    // Predicated region
    $region26: #{tpu_custom_call.1} parent=1 // pred_check
      _
    $region27: #{tpu_custom_call.1} parent=1 // pred_check_branch
      %222 = sbr.rel (0) target = $region29
    $region28: #{tpu_custom_call.1} parent=1 // pred_region
      %224 = vsyncadd [#allocation5], 0
      %s226 = sshll.u32 [#allocation6], 4
      %s227 = int_to_ptr.vmem [resolvable:$true] %s226
      %s228 = sshll.u32 %s3, 4
      %s229 = int_to_ptr.hbm [resolvable:$true] %s228
      %231 = dma.vmem_to_hbm [thread:$0]  %s227, 128, %s229, [#allocation5]
    $region29: #{tpu_custom_call.1} parent=1 // pred_fallthru
      _
    // Predicated region
    $region30: #{tpu_custom_call.1} parent=1 // pred_check
      _
    $region31: #{tpu_custom_call.1} parent=1 // pred_check_branch
      %233 = sbr.rel (0) target = $region33
    $region32: #{tpu_custom_call.1} parent=1 // pred_region
      %235 = dma.done [#allocation5], 128
    $region33: #{tpu_custom_call.1} parent=1 // pred_fallthru
      _
    %236 = vsyncpa [#allocation4], 1
    %237 = vsyncpa [#allocation5], 1

</llo_original>
